<compile_context>
chip_gen: v6e
topology: v6e:2x2x1
jax: 0.10.0
libtpu: 0.0.40
codegen_flags: <defaults>
</compile_context>

<pallas_src>
import functools

import jax
import jax.numpy as jnp
from jax.experimental import pallas as pl
from jax.experimental.pallas import tpu as pltpu


_LANE = 128
_SUBLANE = 8
_MAX_COLS = 128 * 128            # up to 16384 lanes per row
_MIN_BLOCK_BYTES = 1 << 20       # never shrink a block below ~1 MiB / operand
_MIN_PALLAS_BYTES = 256 * 1024   # below this, plain XLA is as fast and fusable


def _tpu_generation():
    try:
        kind = jax.devices()[0].device_kind.lower()
    except Exception:
        return "unknown"
    if "v7" in kind or "tpu7" in kind:
        return "v7x"
    if "v6" in kind:
        return "v6e"
    if "v5" in kind and ("lite" in kind or "5e" in kind):
        return "v5e"
    return "other"


def _block_policy(gen, training_dropout):
    """-> (target block bytes per operand, vmem_limit_bytes, two_tensorcores)."""
    if gen == "v7x":
        # 64 MiB physical VMEM: 3 operands x 2 buffers x 4 MiB = 24 MiB, keep headroom.
        return 4 << 20, 40 << 20, True
    if gen == "v6e":
        return 4 << 20, 48 << 20, False
    if gen == "v5e":
        target = (3 << 20) // 2 if training_dropout else (2 << 20)
        return target, 32 << 20, False
    # v4 / v5p / unknown: conservative.
    return 2 << 20, 24 << 20, False


def _factorize(n):
    """n (multiple of 128) -> (rows, cols), cols = largest divisor*128 <= _MAX_COLS."""
    k = n // _LANE
    best = 1
    d = 1
    while d * d <= k:
        if k % d == 0:
            for cand in (d, k // d):
                if cand * _LANE <= _MAX_COLS and cand > best:
                    best = cand
        d += 1
    cols = best * _LANE
    return n // cols, cols


def _plan_layout(n):
    """Flat length -> (rows, cols, padded_length) with cols a multiple of 128."""
    if n % _LANE == 0:
        rows, cols = _factorize(n)
        return rows, cols, n
    # Pad up to a multiple of 8*128 so a lane-dense factorization always exists.
    n_pad = -(-n // (_SUBLANE * _LANE)) * (_SUBLANE * _LANE)
    rows, cols = _factorize(n_pad)
    return rows, cols, n_pad


def _pick_block_rows(rows, cols, itemsize, target_bytes, two_cores):
    """Rows per block: ~target bytes, multiple of 8 (or the full row extent)."""
    target_elems = max(1, target_bytes // itemsize)
    br = max(_SUBLANE, (target_elems // cols) // _SUBLANE * _SUBLANE)
    if two_cores and rows >= 4 * _SUBLANE:
        # v7x only: want >= 2 blocks per TensorCore, but never drop below the
        # ~1 MiB block floor (sub-MiB blocks fall off the HBM roofline).
        floor_elems = max(1, _MIN_BLOCK_BYTES // itemsize)
        fr = -(-floor_elems // cols)
        floor_rows = max(_SUBLANE, -(-fr // _SUBLANE) * _SUBLANE)
        quarter = max(_SUBLANE, (rows // 4) // _SUBLANE * _SUBLANE)
        if quarter >= floor_rows:
            br = min(br, quarter)
    if br >= rows:
        return rows                      # single block (full-dim exemption)
    return br


def _sublayer_kernel(a_ref, seed_ref, x_ref, outx_ref, o_ref, *,
                     enable, dropout_p, training, compute_dtype):
    """Elementwise hot path: o = x + dropout(a * out_x)."""
    y = outx_ref[...].astype(compute_dtype)

    if enable:
        y = y * a_ref[0].astype(compute_dtype)      # scalar residual param (SMEM, f32)

    if training and dropout_p > 0.0:
        # TODO(synk): RNG stream differs from torch.nn.Dropout (semantics match).
        if dropout_p >= 1.0:
            y = jnp.zeros_like(y)
        else:
            pltpu.prng_seed(seed_ref[0] ^ (pl.program_id(0) * 1103515245 + 12345))
            bits = pltpu.bitcast(pltpu.prng_random_bits(y.shape), jnp.uint32)
            thresh = jnp.uint32(min(int(dropout_p * float(2 ** 32)), 2 ** 32 - 1))
            keep = bits >= thresh                    # P(keep) = 1 - p
            scale = jnp.asarray(1.0 / (1.0 - dropout_p), compute_dtype)
            y = y * jnp.where(keep, scale, jnp.asarray(0.0, compute_dtype))

    o_ref[...] = (x_ref[...].astype(compute_dtype) + y).astype(o_ref.dtype)


def _xla_fallback(x, out_x, a, enable, dropout_p, training, seed):
    y = out_x.astype(jnp.float32)
    if enable:
        y = y * jnp.asarray(a, jnp.float32)
    if training and dropout_p > 0.0:
        if dropout_p >= 1.0:
            y = jnp.zeros_like(y)
        else:
            keep = jax.random.bernoulli(jax.random.PRNGKey(seed),
                                        1.0 - dropout_p, y.shape)
            y = jnp.where(keep, y * (1.0 / (1.0 - dropout_p)), 0.0)
    return (x.astype(jnp.float32) + y).astype(x.dtype)


def sublayer_connection(x, out_x, a, *,
                        enable_res_parameter=True,
                        dropout_p=0.1,
                        training=False,
                        seed=0,
                        use_pallas=None,
                        alias_out_x=False):
    assert x.shape == out_x.shape and x.dtype == out_x.dtype
    orig_shape = x.shape
    n = x.size
    itemsize = jnp.dtype(x.dtype).itemsize

    if use_pallas is None:
        use_pallas = n * itemsize >= _MIN_PALLAS_BYTES
    if n == 0 or not use_pallas:
        return _xla_fallback(x, out_x, a, enable_res_parameter, dropout_p,
                             training, seed)

    gen = _tpu_generation()
    training_dropout = bool(training) and float(dropout_p) > 0.0

    # bf16/f16 native on v6e/v7x in eval mode; f32 math otherwise.
    if (x.dtype == jnp.float32) or training_dropout or gen not in ("v6e", "v7x"):
        compute_dtype = jnp.float32
    else:
        compute_dtype = x.dtype

    target_bytes, vmem_limit, two_cores = _block_policy(gen, training_dropout)
    if jnp.dtype(compute_dtype) != jnp.dtype(x.dtype):
        # f32 temporaries of low-precision blocks add internal scratch.
        target_bytes = max(_MIN_BLOCK_BYTES, target_bytes // 2)

    rows, cols, n_pad = _plan_layout(n)
    block_rows = _pick_block_rows(rows, cols, itemsize, target_bytes, two_cores)

    xf = x.reshape(-1)
    of = out_x.reshape(-1)
    if n_pad != n:
        xf = jnp.pad(xf, (0, n_pad - n))
        of = jnp.pad(of, (0, n_pad - n))
    x2 = xf.reshape(rows, cols)
    ox2 = of.reshape(rows, cols)

    a_arr = jnp.asarray(a, dtype=jnp.float32).reshape(1)
    seed_arr = jnp.asarray([seed], dtype=jnp.int32)

    kernel = functools.partial(
        _sublayer_kernel,
        enable=bool(enable_res_parameter),
        dropout_p=float(dropout_p),
        training=bool(training),
        compute_dtype=compute_dtype,
    )

    out = pl.pallas_call(
        kernel,
        out_shape=jax.ShapeDtypeStruct((rows, cols), x.dtype),
        grid=(pl.cdiv(rows, block_rows),),
        in_specs=[
            pl.BlockSpec(memory_space=pltpu.MemorySpace.SMEM),    # a (f32 scalar)
            pl.BlockSpec(memory_space=pltpu.MemorySpace.SMEM),    # seed (i32 scalar)
            pl.BlockSpec((block_rows, cols), lambda i: (i, 0)),   # x tile
            pl.BlockSpec((block_rows, cols), lambda i: (i, 0)),   # out_x tile
        ],
        out_specs=pl.BlockSpec((block_rows, cols), lambda i: (i, 0)),
        compiler_params=pltpu.CompilerParams(
            dimension_semantics=("parallel",),
            vmem_limit_bytes=vmem_limit),
        cost_estimate=pl.CostEstimate(
            flops=3 * n_pad,
            transcendentals=0,
            bytes_accessed=3 * n_pad * itemsize),
        input_output_aliases=({3: 0} if alias_out_x else {}),
    )(a_arr, seed_arr, x2, ox2)

    out_flat = out.reshape(-1)
    if n_pad != n:
        out_flat = out_flat[:n]
    return out_flat.reshape(orig_shape)


if __name__ == "__main__":
    key = jax.random.PRNGKey(0)
    kx, ko = jax.random.split(key)

    # Small shapes consistent with ConvTimeNet usage: (batch, d_model, seq_len)
    B, D, S = 2, 8, 128
    x = jax.random.normal(kx, (B, D, S), dtype=jnp.float32)
    out_x = jax.random.normal(ko, (B, D, S), dtype=jnp.float32)
    a = 1e-8  # matches nn.Parameter(torch.tensor(1e-08)) init

    # Eval-mode forward, enable_res_parameter=True (force the Pallas path).
    y = jax.block_until_ready(
        sublayer_connection(x, out_x, a, enable_res_parameter=True,
                            dropout_p=0.1, training=False, use_pallas=True))
    ref = x + jnp.float32(a) * out_x
    assert y.shape == x.shape and y.dtype == x.dtype
    assert jnp.allclose(y, ref, atol=1e-6, rtol=1e-6)

    # enable_res_parameter=False branch.
    y2 = jax.block_until_ready(
        sublayer_connection(x, out_x, a, enable_res_parameter=False,
                            dropout_p=0.1, training=False, use_pallas=True))
    assert jnp.allclose(y2, x + out_x, atol=1e-6, rtol=1e-6)

    # Element count not a multiple of 128 -> wrapper pad/slice path.
    x3 = jax.random.normal(kx, (2, 3, 21), dtype=jnp.float32)
    o3 = jax.random.normal(ko, (2, 3, 21), dtype=jnp.float32)
    y3 = jax.block_until_ready(
        sublayer_connection(x3, o3, 0.5, enable_res_parameter=True,
                            dropout_p=0.1, training=False, use_pallas=True))
    assert jnp.allclose(y3, x3 + jnp.float32(0.5) * o3, atol=1e-6, rtol=1e-6)

    # bf16 activations (native bf16 math on v6e/v7x, f32 math elsewhere).
    xb = x.astype(jnp.bfloat16)
    ob = out_x.astype(jnp.bfloat16)
    yb = jax.block_until_ready(
        sublayer_connection(xb, ob, 0.25, enable_res_parameter=True,
                            dropout_p=0.1, training=False, use_pallas=True))
    refb = xb.astype(jnp.float32) + 0.25 * ob.astype(jnp.float32)
    assert yb.dtype == jnp.bfloat16
    assert jnp.allclose(yb.astype(jnp.float32), refb, atol=3e-2, rtol=3e-2)

    # Auto mode on a tiny tensor -> XLA fallback, same numbers.
    y_auto = jax.block_until_ready(
        sublayer_connection(x, out_x, a, enable_res_parameter=True,
                            dropout_p=0.1, training=False))
    assert jnp.allclose(y_auto, ref, atol=1e-6, rtol=1e-6)

    print("KERNEL_OK")
</pallas_src>

<mosaic_0001>
module attributes {stable_mosaic.version = 11 : i64} {
  func.func @_sublayer_kernel(%arg0: i32, %arg1: memref<1xf32, #tpu.memory_space<smem>>, %arg2: memref<1xi32, #tpu.memory_space<smem>>, %arg3: memref<1x2048xf32, #tpu.memory_space<vmem>>, %arg4: memref<1x2048xf32, #tpu.memory_space<vmem>>, %arg5: memref<1x2048xf32, #tpu.memory_space<vmem>>) attributes {dimension_semantics = [#tpu.dimension_semantics<parallel>], iteration_bounds = array<i64: 1>, scalar_prefetch = 0 : i64, scratch_operands = 0 : i64, tpu.core_type = #tpu.core_type<tc>, window_params = [{transform_indices = @transform_0, window_bounds = array<i64: 1>}, {transform_indices = @transform_1, window_bounds = array<i64: 1>}, {transform_indices = @transform_2, window_bounds = array<i64: 1, 2048>}, {transform_indices = @transform_3, window_bounds = array<i64: 1, 2048>}, {transform_indices = @transform_4, window_bounds = array<i64: 1, 2048>}]} {
    %c0 = arith.constant 0 : index
    %c0_0 = arith.constant 0 : index
    %0 = vector.load %arg4[%c0, %c0_0] : memref<1x2048xf32, #tpu.memory_space<vmem>>, vector<1x2048xf32>
    %c0_1 = arith.constant 0 : index
    %1 = memref.load %arg1[%c0_1] : memref<1xf32, #tpu.memory_space<smem>>
    %2 = vector.broadcast %1 : f32 to vector<1x2048xf32>
    %3 = arith.mulf %0, %2 : vector<1x2048xf32>
    %c0_2 = arith.constant 0 : index
    %c0_3 = arith.constant 0 : index
    %4 = vector.load %arg3[%c0_2, %c0_3] : memref<1x2048xf32, #tpu.memory_space<vmem>>, vector<1x2048xf32>
    %5 = arith.addf %4, %3 : vector<1x2048xf32>
    %c0_4 = arith.constant 0 : index
    %c0_5 = arith.constant 0 : index
    %6 = vector.load %arg5[%c0_4, %c0_5] : memref<1x2048xf32, #tpu.memory_space<vmem>>, vector<1x2048xf32>
    tpu.vector_store %arg5[%c0_4, %c0_5], %5 {strides = array<i32>} : memref<1x2048xf32, #tpu.memory_space<vmem>>, vector<1x2048xf32>,
    return
  }
  func.func @transform_0(%arg0: i32) -> i32 {
    %c0_i32 = arith.constant 0 : i32
    %c0_i32_0 = arith.constant 0 : i32
    return %c0_i32 : i32
  }
  func.func @transform_1(%arg0: i32) -> i32 {
    %c0_i32 = arith.constant 0 : i32
    %c0_i32_0 = arith.constant 0 : i32
    return %c0_i32 : i32
  }
  func.func @transform_2(%arg0: i32) -> (i32, i32) {
    %c0_i32 = arith.constant 0 : i32
    %c0_i32_0 = arith.constant 0 : i32
    return %arg0, %c0_i32 : i32, i32
  }
  func.func @transform_3(%arg0: i32) -> (i32, i32) {
    %c0_i32 = arith.constant 0 : i32
    %c0_i32_0 = arith.constant 0 : i32
    return %arg0, %c0_i32 : i32, i32
  }
  func.func @transform_4(%arg0: i32) -> (i32, i32) {
    %c0_i32 = arith.constant 0 : i32
    %c0_i32_0 = arith.constant 0 : i32
    return %arg0, %c0_i32 : i32, i32
  }
}

</mosaic_0001>

<llo_original>
// kernel: tpu_custom_call.1
$region0: #{tpu_custom_call.1}
  #allocation0 [shape = 'u32[]', space=smem, size = 0x4, offset = 0x4, fixed_abs, tag = 'smem constant byte address 0x4 - core index']
  #allocation1 [shape = 'u32[144,128]{1,0:T(1,128)}', space=vmem, size = 0x12000, scoped, tag = 'internal scratch']
  #allocation2 [shape = 'f32[1]{0:T(128)S(6)}', space=smem, size = 0x200, scoped, tag = 'scoped memory for tpu_custom_call.1']
  #allocation3 [shape = 's32[1]{0:T(128)S(6)}', space=smem, size = 0x200, scoped, tag = 'scoped memory for tpu_custom_call.1']
  %s0 = inlined_call_operand.<no memory space> [shape: f32[1], index: 0, kind: input, shape index: {}]
  %s1 = inlined_call_operand.<no memory space> [shape: s32[1], index: 1, kind: input, shape index: {}]
  %s2 = inlined_call_operand.hbm [shape: f32[1,2048], index: 2, kind: input, shape index: {}]
  %s3 = inlined_call_operand.hbm [shape: f32[1,2048], index: 3, kind: input, shape index: {}]
  %s4 = inlined_call_operand.hbm [shape: f32[1,2048], index: 4, kind: output, shape index: {}]
  %s5 = sld [smem:[#allocation0]]
  $region34: #{tpu_custom_call.1} parent=0
    _
  %s7 = ssub.s32 1, %s5
  %s8 = scalar_select 0, %s7, %s5
  %9 = sst [smem:[#allocation2]] %s0
  %10 = sst [smem:[#allocation3]] %s1
  $region1: #{tpu_custom_call.1} parent=0
    #allocation4 [shape = 'u8[8192]{0}', space=vmem, size = 0x2000, scoped, tag = 'input window, operand 2, single buffered']
    #allocation5 [shape = 's32[1]{0}', space=sflag, size = 0x4, scoped, tag = 'scoped memory for tpu_custom_call.1']
    #allocation6 [shape = 's32[1]{0}', space=sflag, size = 0x4, scoped, tag = 'scoped memory for tpu_custom_call.1']
    #allocation7 [shape = 'u8[8192]{0}', space=vmem, size = 0x2000, scoped, tag = 'input window, operand 3, single buffered']
    #allocation8 [shape = 's32[1]{0}', space=sflag, size = 0x4, scoped, tag = 'scoped memory for tpu_custom_call.1']
    #allocation9 [shape = 'u8[8192]{0}', space=vmem, size = 0x2000, scoped, tag = 'output window, operand 0, single buffered']
    %11 = vsyncpa [#allocation5], 0
    %12 = vsyncpa [#allocation8], 0
    %13 = vsyncpa [#allocation6], 0
    // Predicated region
    $region2: #{tpu_custom_call.1} parent=1 // pred_check
      _
    $region3: #{tpu_custom_call.1} parent=1 // pred_check_branch
      %15 = sbr.rel (0) target = $region5
    $region4: #{tpu_custom_call.1} parent=1 // pred_region
      _
    $region5: #{tpu_custom_call.1} parent=1 // pred_fallthru
      _
    // Predicated region
    $region6: #{tpu_custom_call.1} parent=1 // pred_check
      _
    $region7: #{tpu_custom_call.1} parent=1 // pred_check_branch
      %17 = sbr.rel (0) target = $region9
    $region8: #{tpu_custom_call.1} parent=1 // pred_region
      _
    $region9: #{tpu_custom_call.1} parent=1 // pred_fallthru
      _
    // Predicated region
    $region10: #{tpu_custom_call.1} parent=1 // pred_check
      _
    $region11: #{tpu_custom_call.1} parent=1 // pred_check_branch
      %19 = sbr.rel (0) target = $region13
    $region12: #{tpu_custom_call.1} parent=1 // pred_region
      %s21 = ssub.s32 256, 256
      %22 = vsyncadd [#allocation5], %s21
      %s24 = sshll.u32 [#allocation4], 4
      %s25 = int_to_ptr.vmem [resolvable:$true] %s24
      %27 = dma.hbm_to_vmem [thread:$0]  %s2, 256, %s25, [#allocation5]
    $region13: #{tpu_custom_call.1} parent=1 // pred_fallthru
      _
    // Predicated region
    $region14: #{tpu_custom_call.1} parent=1 // pred_check
      _
    $region15: #{tpu_custom_call.1} parent=1 // pred_check_branch
      %29 = sbr.rel (0) target = $region17
    $region16: #{tpu_custom_call.1} parent=1 // pred_region
      %s31 = ssub.s32 256, 256
      %32 = vsyncadd [#allocation8], %s31
      %s34 = sshll.u32 [#allocation7], 4
      %s35 = int_to_ptr.vmem [resolvable:$true] %s34
      %37 = dma.hbm_to_vmem [thread:$0]  %s3, 256, %s35, [#allocation8]
    $region17: #{tpu_custom_call.1} parent=1 // pred_fallthru
      _
    // Predicated region
    $region18: #{tpu_custom_call.1} parent=1 // pred_check
      _
    $region19: #{tpu_custom_call.1} parent=1 // pred_check_branch
      %39 = sbr.rel (0) target = $region21
    $region20: #{tpu_custom_call.1} parent=1 // pred_region
      %40 = dma.done [#allocation5], 256
    $region21: #{tpu_custom_call.1} parent=1 // pred_fallthru
      _
    // Predicated region
    $region22: #{tpu_custom_call.1} parent=1 // pred_check
      _
    $region23: #{tpu_custom_call.1} parent=1 // pred_check_branch
      %42 = sbr.rel (0) target = $region25
    $region24: #{tpu_custom_call.1} parent=1 // pred_region
      %43 = dma.done [#allocation8], 256
    $region25: #{tpu_custom_call.1} parent=1 // pred_fallthru
      _
    %v44 = vld [vmem:[#allocation7] sm:$0xff]
    %v45 = vld [vmem:[#allocation7 + $0x8] sm:$0xff]
    %s46 = sld [smem:[#allocation2]]
    %v47 = vstv %s46
    %v48 = vmul.f32 %v44, %v47
    %v49 = vmul.f32 %v45, %v47
    %v50 = vld [vmem:[#allocation4] sm:$0xff]
    %v51 = vld [vmem:[#allocation4 + $0x8] sm:$0xff]
    %v52 = vadd.f32 %v50, %v48
    %v53 = vadd.f32 %v51, %v49
    %54 = vst [vmem:[#allocation9] sm:$0xff] %v52
    %55 = vst [vmem:[#allocation9 + $0x8] sm:$0xff] %v53
    // Predicated region
    $region26: #{tpu_custom_call.1} parent=1 // pred_check
      _
    $region27: #{tpu_custom_call.1} parent=1 // pred_check_branch
      %57 = sbr.rel (0) target = $region29
    $region28: #{tpu_custom_call.1} parent=1 // pred_region
      %s59 = ssub.s32 256, 256
      %60 = vsyncadd [#allocation6], %s59
      %s62 = sshll.u32 [#allocation9], 4
      %s63 = int_to_ptr.vmem [resolvable:$true] %s62
      %65 = dma.vmem_to_hbm [thread:$0]  %s63, 256, %s4, [#allocation6]
    $region29: #{tpu_custom_call.1} parent=1 // pred_fallthru
      _
    // Predicated region
    $region30: #{tpu_custom_call.1} parent=1 // pred_check
      _
    $region31: #{tpu_custom_call.1} parent=1 // pred_check_branch
      %67 = sbr.rel (0) target = $region33
    $region32: #{tpu_custom_call.1} parent=1 // pred_region
      %68 = dma.done [#allocation6], 256
    $region33: #{tpu_custom_call.1} parent=1 // pred_fallthru
      _
    %69 = vsyncpa [#allocation5], 1
    %70 = vsyncpa [#allocation8], 1
    %71 = vsyncpa [#allocation6], 1

</llo_original>
